<compile_context>
chip_gen: v7x
topology: tpu7x:2x2x1
jax: 0.10.0
libtpu: 0.0.40
codegen_flags: <defaults>
</compile_context>

<pallas_src>
import functools

import jax
import jax.numpy as jnp
from jax.experimental import pallas as pl
from jax.experimental.pallas import tpu as pltpu


def _round_up(x: int, m: int) -> int:
    return (x + m - 1) // m * m


def _round_down(x: int, m: int) -> int:
    return (x // m) * m


def _patch_embed_kernel(x_ref, w_ref, b_ref, o_ref):
    # x_ref: (TM, K_pad)  w_ref: (K_pad, E_pad)  b_ref: (1, E_pad) f32
    # o_ref: (TM, E_pad)
    acc = jnp.dot(x_ref[...], w_ref[...], preferred_element_type=jnp.float32)
    o_ref[...] = (acc + b_ref[...]).astype(o_ref.dtype)
    # TODO(synk): nn.Dropout omitted (identity at inference time).


def _choose_tm(M: int, tm_cap: int, min_tiles: int = 4):
    """Pick TM (multiple of 8). Prefer exact divisors of M (no padding, no
    post-kernel slice) and >= min_tiles grid steps so both v7x TensorCores
    get work. Returns (TM, M_pad)."""
    if M <= 8:
        m_pad = _round_up(M, 8)
        return m_pad, m_pad
    cap = max(8, _round_down(min(tm_cap, M), 8))
    if M >= min_tiles * 8:
        cap = min(cap, _round_up((M + min_tiles - 1) // min_tiles, 8))
    t = cap
    while t >= 8:
        if M % t == 0:
            return t, M          # exact tiling: no padding, slice is a no-op
        t -= 8
    return cap, _round_up(M, cap)  # fallback: pad M (tail rows sliced off)


def patch_embed_1d(x, weight, bias, *, patch_size,
                   out_dtype=None, compute_dtype=None,
                   tm_max: int = 2048,
                   vmem_budget_bytes: int = 32 * 1024 * 1024):
    """x: (B, C, V), weight: (E, C, P), bias: (E,) -> (B, V//P, E)."""
    B, C, V = x.shape
    E = weight.shape[0]
    P = patch_size
    assert V % P == 0, "time_len must be divisible by patch_size"
    N = V // P          # num_patches
    M = B * N           # rows of the folded matmul
    K = C * P           # contraction size (small: in_chans * patch_size)

    out_dtype = jnp.dtype(out_dtype) if out_dtype is not None else x.dtype
    compute_dtype = (jnp.dtype(compute_dtype)
                     if compute_dtype is not None else x.dtype)
    in_size = jnp.dtype(compute_dtype).itemsize
    out_size = jnp.dtype(out_dtype).itemsize

    # ---- tile / padding selection --------------------------------------
    # Lane-dense output: pad E only when it is not already a multiple of 128.
    E_pad = E if E % 128 == 0 else _round_up(E, 128)
    # Sublane-align K only; padding K to 128 would inflate x ~128/K for no win
    # on this store-bound layer.
    K_pad = _round_up(K, 8)

    # VMEM-derived TM cap: double-buffered x/out blocks + resident w/bias +
    # f32 matmul result, kept under a budget that fits v7x's 64 MiB VMEM.
    fixed = 2 * K_pad * E_pad * in_size + 2 * 8 * E_pad * 4
    per_row = 2 * (K_pad * in_size + E_pad * out_size) + E_pad * 4
    tm_cap_vmem = max(8, (vmem_budget_bytes - fixed) // per_row)
    TM, M_pad = _choose_tm(M, min(tm_max, tm_cap_vmem))

    # ---- fold conv into matmul operands (x is the smallest tensor here) --
    # (B, C, V) -> (B, C, N, P) -> (B, N, C, P) -> (M, K), zero-padded.
    x_mat = x.reshape(B, C, N, P).transpose(0, 2, 1, 3).reshape(M, K)
    x_mat = jnp.pad(x_mat, ((0, M_pad - M), (0, K_pad - K))).astype(compute_dtype)
    # (E, C, P) -> (K, E), zero-padded to (K_pad, E_pad).
    w_mat = jnp.pad(weight.reshape(E, K).T.astype(compute_dtype),
                    ((0, K_pad - K), (0, E_pad - E)))
    # bias kept in f32: accumulate + bias-add in f32, cast only at the store.
    b_row = jnp.pad(bias.astype(jnp.float32), (0, E_pad - E)).reshape(1, E_pad)

    grid_m = M_pad // TM

    # vmem_limit from actual tile sizes (+ headroom), not a flat constant.
    vmem_need = (2 * TM * K_pad * in_size          # x blocks (double-buffered)
                 + 2 * K_pad * E_pad * in_size     # weight (resident)
                 + 2 * 8 * E_pad * 4               # bias row (sublane-padded)
                 + 2 * TM * E_pad * out_size       # output blocks
                 + TM * E_pad * 4)                 # f32 matmul result
    vmem_limit = int(min(max(vmem_need + (4 << 20), 16 << 20), 56 << 20))

    out = pl.pallas_call(
        _patch_embed_kernel,
        out_shape=jax.ShapeDtypeStruct((M_pad, E_pad), out_dtype),
        grid=(grid_m,),
        in_specs=[
            pl.BlockSpec((TM, K_pad), lambda i: (i, 0)),
            pl.BlockSpec((K_pad, E_pad), lambda i: (0, 0)),   # resident after step 0
            pl.BlockSpec((1, E_pad), lambda i: (0, 0)),       # resident after step 0
        ],
        out_specs=pl.BlockSpec((TM, E_pad), lambda i: (i, 0)),
        compiler_params=pltpu.CompilerParams(
            dimension_semantics=("parallel",),
            vmem_limit_bytes=vmem_limit,
        ),
        cost_estimate=pl.CostEstimate(
            flops=2 * M_pad * K_pad * E_pad,
            transcendentals=0,
            bytes_accessed=(M_pad * K_pad * in_size + K_pad * E_pad * in_size
                            + E_pad * 4 + M_pad * E_pad * out_size),
        ),
    )(x_mat, w_mat, b_row)

    # With exact tiling (the common case) this slice is a no-op.  Note: padded
    # M rows contain `bias` (acc=0 + bias), so the slice must stay whenever
    # M_pad != M.
    if M_pad != M or E_pad != E:
        out = out[:M, :E]
    return out.reshape(B, N, E)


if __name__ == "__main__":
    # Small shapes consistent with the module (scaled down).
    B = 2          # batch
    C = 4          # in_chans
    V = 16         # time_len
    P = 1          # patch_size (module default)
    E = 32         # embed_dim

    key = jax.random.PRNGKey(0)
    kx, kw, kb = jax.random.split(key, 3)
    x = jax.random.normal(kx, (B, C, V), dtype=jnp.float32)
    weight = jax.random.normal(kw, (E, C, P), dtype=jnp.float32) * 0.02
    bias = jax.random.normal(kb, (E,), dtype=jnp.float32) * 0.02

    fwd = jax.jit(functools.partial(patch_embed_1d, patch_size=P))
    out = jax.block_until_ready(fwd(x, weight, bias))

    # Pure-JAX reference of the Conv1d(stride=kernel) + transpose forward.
    ref = jnp.einsum(
        "bcnp,ecp->bne",
        x.reshape(B, C, V // P, P),
        weight,
    ) + bias[None, None, :]

    assert out.shape == (B, V // P, E), out.shape
    assert jnp.allclose(out, ref, atol=1e-5, rtol=1e-5), "mismatch vs reference"
    print("KERNEL_OK")
</pallas_src>

<mosaic_0001>
module attributes {stable_mosaic.version = 11 : i64} {
  func.func @_patch_embed_kernel(%arg0: i32, %arg1: memref<8x8xf32, #tpu.memory_space<vmem>>, %arg2: memref<8x128xf32, #tpu.memory_space<vmem>>, %arg3: memref<1x128xf32, #tpu.memory_space<vmem>>, %arg4: memref<8x128xf32, #tpu.memory_space<vmem>>) attributes {dimension_semantics = [#tpu.dimension_semantics<parallel>], iteration_bounds = array<i64: 4>, scalar_prefetch = 0 : i64, scratch_operands = 0 : i64, tpu.core_type = #tpu.core_type<tc>, window_params = [{transform_indices = @transform_0, window_bounds = array<i64: 8, 8>}, {pipeline_mode = #tpu.pipeline_mode<synchronous>, transform_indices = @transform_1, window_bounds = array<i64: 8, 128>}, {pipeline_mode = #tpu.pipeline_mode<synchronous>, transform_indices = @transform_2, window_bounds = array<i64: 1, 128>}, {transform_indices = @transform_3, window_bounds = array<i64: 8, 128>}]} {
    %c0 = arith.constant 0 : index
    %c0_0 = arith.constant 0 : index
    %0 = vector.load %arg1[%c0, %c0_0] : memref<8x8xf32, #tpu.memory_space<vmem>>, vector<8x8xf32>
    %c0_1 = arith.constant 0 : index
    %c0_2 = arith.constant 0 : index
    %1 = vector.load %arg2[%c0_1, %c0_2] : memref<8x128xf32, #tpu.memory_space<vmem>>, vector<8x128xf32>
    %cst = arith.constant dense<0.000000e+00> : vector<8x128xf32>
    %2 = tpu.matmul %0, %1, %cst {dimension_numbers = #tpu.dot_dimension_numbers<[1], [0], [0], [1], [0, 0, 1, 1], [], []>} : vector<8x8xf32>, vector<8x128xf32>, vector<8x128xf32> -> vector<8x128xf32>
    %c0_3 = arith.constant 0 : index
    %c0_4 = arith.constant 0 : index
    %3 = vector.load %arg3[%c0_3, %c0_4] : memref<1x128xf32, #tpu.memory_space<vmem>>, vector<1x128xf32>
    %4 = vector.broadcast %3 : vector<1x128xf32> to vector<8x128xf32>
    %5 = arith.addf %2, %4 : vector<8x128xf32>
    %c0_5 = arith.constant 0 : index
    %c0_6 = arith.constant 0 : index
    %6 = vector.load %arg4[%c0_5, %c0_6] : memref<8x128xf32, #tpu.memory_space<vmem>>, vector<8x128xf32>
    tpu.vector_store %arg4[%c0_5, %c0_6], %5 {strides = array<i32>} : memref<8x128xf32, #tpu.memory_space<vmem>>, vector<8x128xf32>,
    return
  }
  func.func @transform_0(%arg0: i32) -> (i32, i32) {
    %c0_i32 = arith.constant 0 : i32
    %c0_i32_0 = arith.constant 0 : i32
    return %arg0, %c0_i32 : i32, i32
  }
  func.func @transform_1(%arg0: i32) -> (i32, i32) {
    %c0_i32 = arith.constant 0 : i32
    %c0_i32_0 = arith.constant 0 : i32
    %c0_i32_1 = arith.constant 0 : i32
    return %c0_i32, %c0_i32_0 : i32, i32
  }
  func.func @transform_2(%arg0: i32) -> (i32, i32) {
    %c0_i32 = arith.constant 0 : i32
    %c0_i32_0 = arith.constant 0 : i32
    %c0_i32_1 = arith.constant 0 : i32
    return %c0_i32, %c0_i32_0 : i32, i32
  }
  func.func @transform_3(%arg0: i32) -> (i32, i32) {
    %c0_i32 = arith.constant 0 : i32
    %c0_i32_0 = arith.constant 0 : i32
    return %arg0, %c0_i32 : i32, i32
  }
}

</mosaic_0001>

<llo_original>
// kernel: patch_embed_1d.1
$region0: #{patch_embed_1d.1}
  #allocation0 [shape = 'u32[]', space=smem, size = 0x4, offset = 0x4, fixed_abs, tag = 'smem constant byte address 0x4 - core index']
  #allocation1 [shape = 'u32[144,128]{1,0:T(1,128)}', space=vmem, size = 0x12000, scoped, tag = 'internal scratch']
  %s0 = inlined_call_operand.vmem [shape: f32[32,8], index: 0, kind: input, shape index: {}]
  %s1 = inlined_call_operand.vmem [shape: f32[8,128], index: 1, kind: input, shape index: {}]
  %s2 = inlined_call_operand.vmem [shape: f32[1,128], index: 2, kind: input, shape index: {}]
  %s3 = inlined_call_operand.hbm [shape: f32[32,128], index: 3, kind: output, shape index: {}]
  %s4 = sld [smem:[#allocation0]]
  $region45: #{patch_embed_1d.1} parent=0
    _
  %s6 = ssub.s32 1, %s4
  %s7 = scalar_select 0, %s6, %s4
  $region1: #{patch_embed_1d.1} parent=0
    #allocation2 [shape = 'u8[8192]{0}', space=vmem, size = 0x2000, scoped, tag = 'output window, operand 0']
    #allocation3 [shape = 's32[2]{0}', space=sflag, size = 0x8, scoped, tag = 'scoped memory for patch_embed_1d.1']
    %8 = vsyncpa [#allocation3], 0
    %s9 = scalar_lea.sflag [#allocation3], 1
    %10 = vsyncpa %s9, 0
    loop: start=0, step=1, limit=6
    $region2: #{patch_embed_1d.1} parent=1 // loop_pre_header
      _
    $region3: #{patch_embed_1d.1} parent=1 // loop_header
      %s12 = sphi 0, %s16
      %p13 = scmp.ge.s32.totalorder %s12, 6
      %s22 = sphi 0, %s24
      %s25 = sphi 0, %s22
      %s26 = sphi 0, %s25
      %s42 = sphi 0, %s26
      %s46 = sphi 0, %s46
      %s48 = sphi 0, %s46
      %s49 = sphi 0, %s48
      %s63 = sphi 0, %s49
      %s67 = sphi 0, %s67
      %s69 = sphi 0, %s67
      %s70 = sphi 0, %s69
      %s84 = sphi 0, %s70
      %s90 = sphi 0, %s92
      %s93 = sphi 0, %s90
      %s94 = sphi 0, %s93
      %s110 = sphi 0, %s94
    $region4: #{patch_embed_1d.1} parent=1 // loop_header_branch
      %15 = sbr.rel (%p13) target = $region8
    $region5: #{patch_embed_1d.1} parent=1 // loop_body
      %s17 = ssub.s32 %s12, 1
      %s18 = ssub.s32 %s12, 2
      %s19 = sadd.s32 %s12, 1
      %s20 = ssub.s32 %s12, %s19
      %p21 = scmp.eq.s32.totalorder %s20, 0
      %s23 = sadd.s32 %s22, 1
      %s24 = scalar_select %p21, %s22, %s23
      %p27 = pneg %p21
      %p28 = scmp.eq.s32.totalorder %s12, 3
      %p29 = por %p27, %p28
      %p30 = scmp.ne.s32.totalorder %s22, %s25
      %p31 = scmp.eq.s32.totalorder %s12, 0
      %p32 = por %p30, %p31
      %p33 = scmp.ne.s32.totalorder %s22, %s25
      %p34 = scmp.eq.s32.totalorder %s17, 3
      %p35 = por %p33, %p34
      %p36 = scmp.ne.s32.totalorder %s25, %s26
      %p37 = scmp.eq.s32.totalorder %s17, 0
      %p38 = por %p36, %p37
      %p39 = scmp.ne.s32.totalorder %s25, %s26
      %p40 = scmp.eq.s32.totalorder %s18, 3
      %p41 = por %p39, %p40
      %p43 = scmp.ne.s32.totalorder %s26, %s42
      %p44 = scmp.eq.s32.totalorder %s18, 0
      %p45 = por %p43, %p44
      %s47 = sadd.s32 %s46, 1
      %p50 = scmp.eq.s32.totalorder %s12, 3
      %p51 = scmp.ne.s32.totalorder %s46, %s48
      %p52 = scmp.eq.s32.totalorder %s12, 0
      %p53 = por %p51, %p52
      %p54 = scmp.ne.s32.totalorder %s46, %s48
      %p55 = scmp.eq.s32.totalorder %s17, 3
      %p56 = por %p54, %p55
      %p57 = scmp.ne.s32.totalorder %s48, %s49
      %p58 = scmp.eq.s32.totalorder %s17, 0
      %p59 = por %p57, %p58
      %p60 = scmp.ne.s32.totalorder %s48, %s49
      %p61 = scmp.eq.s32.totalorder %s18, 3
      %p62 = por %p60, %p61
      %p64 = scmp.ne.s32.totalorder %s49, %s63
      %p65 = scmp.eq.s32.totalorder %s18, 0
      %p66 = por %p64, %p65
      %s68 = sadd.s32 %s67, 1
      %p71 = scmp.eq.s32.totalorder %s12, 3
      %p72 = scmp.ne.s32.totalorder %s67, %s69
      %p73 = scmp.eq.s32.totalorder %s12, 0
      %p74 = por %p72, %p73
      %p75 = scmp.ne.s32.totalorder %s67, %s69
      %p76 = scmp.eq.s32.totalorder %s17, 3
      %p77 = por %p75, %p76
      %p78 = scmp.ne.s32.totalorder %s69, %s70
      %p79 = scmp.eq.s32.totalorder %s17, 0
      %p80 = por %p78, %p79
      %p81 = scmp.ne.s32.totalorder %s69, %s70
      %p82 = scmp.eq.s32.totalorder %s18, 3
      %p83 = por %p81, %p82
      %p85 = scmp.ne.s32.totalorder %s70, %s84
      %p86 = scmp.eq.s32.totalorder %s18, 0
      %p87 = por %p85, %p86
      %s88 = ssub.s32 %s12, %s19
      %p89 = scmp.eq.s32.totalorder %s88, 0
      %s91 = sadd.s32 %s90, 1
      %s92 = scalar_select %p89, %s90, %s91
      %p95 = pneg %p89
      %p96 = scmp.eq.s32.totalorder %s12, 3
      %p97 = por %p95, %p96
      %p98 = scmp.ne.s32.totalorder %s90, %s93
      %p99 = scmp.eq.s32.totalorder %s12, 0
      %p100 = por %p98, %p99
      %p101 = scmp.ne.s32.totalorder %s90, %s93
      %p102 = scmp.eq.s32.totalorder %s17, 3
      %p103 = por %p101, %p102
      %p104 = scmp.ne.s32.totalorder %s93, %s94
      %p105 = scmp.eq.s32.totalorder %s17, 0
      %p106 = por %p104, %p105
      %p107 = scmp.ne.s32.totalorder %s93, %s94
      %p108 = scmp.eq.s32.totalorder %s18, 3
      %p109 = por %p107, %p108
      %p111 = scmp.ne.s32.totalorder %s94, %s110
      %p112 = scmp.eq.s32.totalorder %s18, 0
      %p113 = por %p111, %p112
      %p114 = scmp.le.s32.totalorder 1, %s12
      %p115 = scmp.lt.s32.totalorder %s12, 5
      %p116 = pnand %p114, %p115
      %p117 = pneg %p116
      // Predicated region
      $region9: #{patch_embed_1d.1} parent=5 // pred_check
        _
      $region10: #{patch_embed_1d.1} parent=5 // pred_check_branch
        %119 = sbr.rel (%p116) target = $region12
      $region11: #{patch_embed_1d.1} parent=5 // pred_region
        %s120 = ssub.s32 %s12, 1
        // Predicated region
        $region13: #{patch_embed_1d.1} parent=11 // pred_check
          %p121 = pneg %p59
        $region14: #{patch_embed_1d.1} parent=11 // pred_check_branch
          %123 = sbr.rel (%p121) target = $region16
        $region15: #{patch_embed_1d.1} parent=11 // pred_region
          _
        $region16: #{patch_embed_1d.1} parent=11 // pred_fallthru
          _
        // Predicated region
        $region17: #{patch_embed_1d.1} parent=11 // pred_check
          %p124 = pneg %p80
        $region18: #{patch_embed_1d.1} parent=11 // pred_check_branch
          %126 = sbr.rel (%p124) target = $region20
        $region19: #{patch_embed_1d.1} parent=11 // pred_region
          _
        $region20: #{patch_embed_1d.1} parent=11 // pred_fallthru
          _
      $region12: #{patch_embed_1d.1} parent=5 // pred_fallthru
        _
      %p127 = scmp.lt.s32.totalorder %s12, 4
      // Predicated region
      $region21: #{patch_embed_1d.1} parent=5 // pred_check
        %p128 = pneg %p127
      $region22: #{patch_embed_1d.1} parent=5 // pred_check_branch
        %130 = sbr.rel (%p128) target = $region24
      $region23: #{patch_embed_1d.1} parent=5 // pred_region
        // Predicated region
        $region25: #{patch_embed_1d.1} parent=23 // pred_check
          %p131 = pneg %p32
        $region26: #{patch_embed_1d.1} parent=23 // pred_check_branch
          %133 = sbr.rel (%p131) target = $region28
        $region27: #{patch_embed_1d.1} parent=23 // pred_region
          %p134 = scmp.lt.s32.totalorder %s12, 3
          %s135 = scalar_select %p134, %s12, 3
          %s136 = smul.addr %s135, 8
          %s137 = scalar_lea.vmem %s0, %s136
        $region28: #{patch_embed_1d.1} parent=23 // pred_fallthru
          _
      $region24: #{patch_embed_1d.1} parent=5 // pred_fallthru
        _
      %p138 = scmp.le.s32.totalorder 1, %s12
      %p139 = scmp.lt.s32.totalorder %s12, 5
      %p140 = pnand %p138, %p139
      %p141 = pneg %p140
      // Predicated region
      $region29: #{patch_embed_1d.1} parent=5 // pred_check
        _
      $region30: #{patch_embed_1d.1} parent=5 // pred_check_branch
        %143 = sbr.rel (%p140) target = $region32
      $region31: #{patch_embed_1d.1} parent=5 // pred_region
        %s144 = ssub.s32 %s12, 1
        %p145 = scmp.lt.s32.totalorder %s17, 3
        %s146 = scalar_select %p145, %s17, 3
        %s147 = smul.addr %s146, 8
        %s148 = scalar_lea.vmem %s0, %s147
        %p149 = pneg %p38
        %p150 = pneg %p35
        %p151 = pneg %p59
        %p152 = pneg %p56
        %p153 = pneg %p80
        %p154 = pneg %p77
        %p155 = pneg %p106
        %p156 = pneg %p103
        %s157 = sand.u32 %s93, 1
        %s158 = scalar_lea.sflag [#allocation3], %s157
        %s159 = sand.u32 %s93, 1
        %s160 = smul.addr %s159, 8
        %s161 = scalar_lea.vmem [#allocation2], %s160
        %p162 = scmp.lt.s32.totalorder %s17, 3
        %s163 = scalar_select %p162, %s17, 3
        %s164 = smul.addr %s163, 8
        %s165 = scalar_lea.vmem %s0, %s164
        %v166 = vld [vmem:[%s165] sm:$0xff]
        %v167 = vld [vmem:[%s1] sm:$0xff]
        %v168 = vld [vmem:[%s2] sm:$0x1]
        %v170 = vlaneseq
        %v171 = vshrl.u32 %v170, 7
        %v172 = vsub.s32 0, %v171
        %v173 = vrot.slane %v168, %v172
        %vm175 = vcmask 64512
        %v177 = vsel %vm175, %v166, 0
        %179 = vmatprep.subr.mxu0 0.0
        %180 = vmatpush1.msra.mxu0 %v167
        %181 = vmatprep.subr.mxu0 0.0
        %182 = vmatpush1.msra.mxu0 0.0
        %183 = vmatprep.subr.mxu0 0.0
        %184 = vmatpush1.msra.mxu0 0.0
        %185 = vmatprep.subr.mxu0 0.0
        %186 = vmatpush1.msra.mxu0 0.0
        %187 = vmatprep.subr.mxu0 0.0
        %188 = vmatpush1.msra.mxu0 0.0
        %189 = vmatprep.subr.mxu0 0.0
        %190 = vmatpush1.msra.mxu0 0.0
        %191 = vmatprep.subr.mxu0 0.0
        %192 = vmatpush1.msra.mxu0 0.0
        %193 = vmatprep.subr.mxu0 0.0
        %194 = vmatpush1.msra.mxu0 0.0
        %195 = vmatprep.subr.mxu0 0.0
        %196 = vmatpush1.msra.mxu0 0.0
        %197 = vmatprep.subr.mxu0 0.0
        %198 = vmatpush1.msra.mxu0 0.0
        %199 = vmatprep.subr.mxu0 0.0
        %200 = vmatpush1.msra.mxu0 0.0
        %201 = vmatprep.subr.mxu0 0.0
        %202 = vmatpush1.msra.mxu0 0.0
        %203 = vmatprep.subr.mxu0 0.0
        %204 = vmatpush1.msra.mxu0 0.0
        %205 = vmatprep.subr.mxu0 0.0
        %206 = vmatpush1.msra.mxu0 0.0
        %207 = vmatprep.subr.mxu0 0.0
        %208 = vmatpush1.msra.mxu0 0.0
        %209 = vmatprep.subr.mxu0 0.0
        %210 = vmatpush1.msra.mxu0 0.0
        %211 = vmatprep.subr.mxu0 0.0
        %212 = vmatpush1.msra.mxu0 0.0
        %213 = vmatprep.subr.mxu0 0.0
        %214 = vmatpush1.msra.mxu0 0.0
        %215 = vmatprep.subr.mxu0 0.0
        %216 = vmatpush1.msra.mxu0 0.0
        %217 = vmatprep.subr.mxu0 0.0
        %218 = vmatpush1.msra.mxu0 0.0
        %219 = vmatprep.subr.mxu0 0.0
        %220 = vmatpush1.msra.mxu0 0.0
        %221 = vmatprep.subr.mxu0 0.0
        %222 = vmatpush1.msra.mxu0 0.0
        %223 = vmatprep.subr.mxu0 0.0
        %224 = vmatpush1.msra.mxu0 0.0
        %225 = vmatprep.subr.mxu0 0.0
        %226 = vmatpush1.msra.mxu0 0.0
        %227 = vmatprep.subr.mxu0 0.0
        %228 = vmatpush1.msra.mxu0 0.0
        %229 = vmatprep.subr.mxu0 0.0
        %230 = vmatpush1.msra.mxu0 0.0
        %231 = vmatprep.subr.mxu0 0.0
        %232 = vmatpush1.msra.mxu0 0.0
        %233 = vmatprep.subr.mxu0 0.0
        %234 = vmatpush1.msra.mxu0 0.0
        %235 = vmatprep.subr.mxu0 0.0
        %236 = vmatpush1.msra.mxu0 0.0
        %237 = vmatprep.subr.mxu0 0.0
        %238 = vmatpush1.msra.mxu0 0.0
        %239 = vmatprep.subr.mxu0 0.0
        %240 = vmatpush1.msra.mxu0 0.0
        %241 = vmatprep.subr.mxu0 0.0
        %242 = vmatpush1.msra.mxu0 0.0
        %243 = vmatprep.mubr.f32.mxu0 0.0
        %244 = vmatmul.mubr.f32.gmra.mrb[0].mxu0 %v177
        %v245 = vpop.f32.mrb[0].mxu0
        %v246 = vadd.f32 %v173, %v245
        %v247 = vpop.f32.mrb[0].mxu0
        %248 = vdwg.mxu0
        %249 = vst [vmem:[%s161] sm:$0xff] %v246
        %s250 = sand.u32 %s93, 1
        %s251 = scalar_lea.sflag [#allocation3], %s250
        %s252 = sand.u32 %s93, 1
        %s253 = smul.addr %s252, 8
        %s254 = scalar_lea.vmem [#allocation2], %s253
        // Predicated region
        $region33: #{patch_embed_1d.1} parent=31 // pred_check
          %p255 = pneg %p103
        $region34: #{patch_embed_1d.1} parent=31 // pred_check_branch
          %257 = sbr.rel (%p255) target = $region36
        $region35: #{patch_embed_1d.1} parent=31 // pred_region
          %s259 = ssub.s32 128, 128
          %260 = vsyncadd %s251, %s259
          %s261 = smul.addr %s17, 128
          %s262 = scalar_lea.hbm %s3, %s261
          %s264 = sshll.u32 %s254, 4
          %s265 = int_to_ptr.vmem [resolvable:$true] %s264
          %267 = dma.vmem_to_hbm [thread:$0]  %s265, 128, %s262, %s251
        $region36: #{patch_embed_1d.1} parent=31 // pred_fallthru
          _
      $region32: #{patch_embed_1d.1} parent=5 // pred_fallthru
        _
      %p268 = scmp.le.s32.totalorder 2, %s12
      // Predicated region
      $region37: #{patch_embed_1d.1} parent=5 // pred_check
        %p269 = pneg %p268
      $region38: #{patch_embed_1d.1} parent=5 // pred_check_branch
        %271 = sbr.rel (%p269) target = $region40
      $region39: #{patch_embed_1d.1} parent=5 // pred_region
        %s272 = ssub.s32 %s12, 2
        // Predicated region
        $region41: #{patch_embed_1d.1} parent=39 // pred_check
          %p273 = pneg %p109
        $region42: #{patch_embed_1d.1} parent=39 // pred_check_branch
          %275 = sbr.rel (%p273) target = $region44
        $region43: #{patch_embed_1d.1} parent=39 // pred_region
          %s276 = sand.u32 %s94, 1
          %s277 = scalar_lea.sflag [#allocation3], %s276
          %s278 = sand.u32 %s94, 1
          %s279 = smul.addr %s278, 8
          %s280 = scalar_lea.vmem [#allocation2], %s279
          %281 = dma.done %s277, 128
        $region44: #{patch_embed_1d.1} parent=39 // pred_fallthru
          _
      $region40: #{patch_embed_1d.1} parent=5 // pred_fallthru
        _
    $region6: #{patch_embed_1d.1} parent=1 // loop_footer
      %s16 = sadd.s32 1, %s12
    $region7: #{patch_embed_1d.1} parent=1 // loop_footer_branch
      %11 = sbr.rel target = $region3
    $region8: #{patch_embed_1d.1} parent=1 // loop_exit
      _
    %282 = vsyncpa [#allocation3], 1
    %s283 = scalar_lea.sflag [#allocation3], 1
    %284 = vsyncpa %s283, 1

</llo_original>
